<compile_context>
chip_gen: v7x
topology: tpu7x:2x2x1
jax: 0.10.0
libtpu: 0.0.40
codegen_flags: <defaults>
</compile_context>

<pallas_src>
import functools

import jax
import jax.numpy as jnp
import numpy as np
from jax.experimental import pallas as pl
from jax.experimental.pallas import tpu as pltpu

IGNORE_INDEX = -100
EPS = 0.01
DATA_PROP = [
    [5.53, 10.41, 2.22, 81.84],
    [0.17, 0.06, 0.03, 0.07, 0.36, 0.6, 98.71],
    [1.36, 0.01, 0.0, 0.42, 4.19, 0.12, 13.58, 80.1, 0.23],
    [3.24, 0.24, 0.15, 4.79, 0.7, 0.71, 7.11, 0.23, 0.24, 0.92, 37.7, 29.32, 14.67],
    [8.01, 0.81, 2.28, 88.9],
]
TINY = 1e-37          # clamp for the per-head sum of exps (shared-max guard)
MAX_TILE_N = 4096     # rows per batch tile (review: amortise per-step overhead)


def _round_up(x, m):
    return ((x + m - 1) // m) * m


def _num_tensorcores():
    """Best-effort TensorCores-per-chip (2 on v4/v5p/v7x-class parts, else 1)."""
    try:
        info = pltpu.get_tpu_info()
        for name in ("num_cores", "core_count", "num_tensorcores",
                     "tensorcores_per_chip", "cores_per_chip"):
            v = getattr(info, name, None)
            if isinstance(v, int) and v > 0:
                return max(1, min(2, v))
    except Exception:
        pass
    try:
        kind = jax.devices()[0].device_kind.lower()
        if ("v7" in kind) or ("tpu7" in kind) or ("v4" in kind) or ("v5p" in kind):
            return 2
    except Exception:
        pass
    return 1


def _make_kernel(c_list):
    """Kernel over one (TILE_N, C_total) batch tile covering ALL heads."""
    n_tasks = len(c_list)
    offsets = [0]
    for c in c_list[:-1]:
        offsets.append(offsets[-1] + c)
    c_total = int(sum(c_list))

    def kernel(pred_ref, tgt_ref, out_ref):
        t = pl.program_id(1)  # batch-tile index (reduction / "arbitrary" axis)

        @pl.when(t == 0)
        def _():
            out_ref[...] = jnp.zeros_like(out_ref)

        logits = pred_ref[...].astype(jnp.float32)   # (T, C), upcast if bf16
        tgtf = tgt_ref[...]                          # (T, H) f32 global col idx; -1 = ignored

        # --- tiny static segment matrices, rebuilt from iota + Python-constant
        #     offsets each step (no captured array constants; ~10 ops on
        #     <= (37,37)-shaped data, negligible vs. the (T,C) work) ----------
        lane = jax.lax.broadcasted_iota(jnp.int32, (1, c_total), 1)        # (1, C)
        sub = jax.lax.broadcasted_iota(jnp.int32, (c_total, 1), 0)         # (C, 1)
        hrow = jax.lax.broadcasted_iota(jnp.int32, (n_tasks, c_total), 0)  # (H, C)
        hid_lane = jnp.zeros((1, c_total), jnp.int32)
        hid_sub = jnp.zeros((c_total, 1), jnp.int32)
        for off in offsets[1:]:
            hid_lane = hid_lane + (lane >= off).astype(jnp.int32)
            hid_sub = hid_sub + (sub >= off).astype(jnp.int32)
        same_head = (hid_sub == hid_lane).astype(jnp.float32)    # (C, C) 0/1
        head_onehot = (hrow == hid_lane).astype(jnp.float32)     # (H, C) 0/1
        col_f = lane.astype(jnp.float32)                         # (1, C)

        # --- shared-max log-softmax over all heads in one pass --------------
        m_g = jnp.max(logits, axis=-1, keepdims=True)            # (T, 1)
        x = logits - m_g                                         # (T, C)
        e = jnp.exp(x)                                           # single EUP pass
        # Per-head sum of exps, already broadcast back to each head's own
        # columns, on the MXU.  fp32 contract precision keeps it bit-faithful
        # to a lane-wise f32 sum (RHS is 0/1 so the cost is modest).
        s_full = jnp.dot(e, same_head,
                         preferred_element_type=jnp.float32,
                         precision=jax.lax.Precision.HIGHEST)
        # Guard: with a shared max, a head whose logits sit ~88+ ln-units
        # below the global max would underflow to s == 0 -> log(0); clamping
        # keeps the result finite (exact whenever the clamp is inactive).
        s_full = jnp.maximum(s_full, jnp.float32(TINY))
        nll = jnp.log(s_full) - x          # (T, C): per-column -log_softmax

        # --- target one-hot via MXU ------------------------------------------
        # tgt_full[r, c] = target column of head(c) in row r (exact: all values
        # are small integers, representable at any MXU precision).
        tgt_full = jnp.dot(tgtf, head_onehot, preferred_element_type=jnp.float32)
        hit = (tgt_full == col_f).astype(jnp.float32)            # (T, C)

        # Unweighted per-column partial sums; class weights (per-column
        # constants) are applied in the JAX finalisation.
        out_ref[0, 0:1, :] += jnp.sum(hit * nll, axis=0, keepdims=True)
        out_ref[0, 1:2, :] += jnp.sum(hit, axis=0, keepdims=True)

    return kernel


@functools.partial(jax.jit, static_argnums=(3, 4, 5))
def _run_packed(pred_cat, tgt_globalf, w_cat, c_list, tile_n, tiles_per_split):
    n_pad = pred_cat.shape[0]
    c_total = int(sum(c_list))
    n_tasks = len(c_list)
    n_split = n_pad // (tile_n * tiles_per_split)

    out = pl.pallas_call(
        _make_kernel(c_list),
        out_shape=jax.ShapeDtypeStruct((n_split, 2, c_total), jnp.float32),
        grid_spec=pltpu.PrefetchScalarGridSpec(
            num_scalar_prefetch=0,
            grid=(n_split, tiles_per_split),
            in_specs=[
                pl.BlockSpec((tile_n, c_total),
                             lambda p, t: (p * tiles_per_split + t, 0)),
                pl.BlockSpec((tile_n, n_tasks),
                             lambda p, t: (p * tiles_per_split + t, 0)),
            ],
            out_specs=pl.BlockSpec((1, 2, c_total), lambda p, t: (p, 0, 0)),
        ),
        compiler_params=pltpu.CompilerParams(
            dimension_semantics=("parallel", "arbitrary"),
            vmem_limit_bytes=48 * 1024 * 1024),
    )(pred_cat, tgt_globalf)

    # Finalisation on 2 x 37 floats: apply class weights, per-head safe divide.
    cols = jnp.sum(out, axis=0)            # (2, C)
    wnum = cols[0] * w_cat                 # weighted numerators per column
    wden = cols[1] * w_cat                 # weighted denominators per column
    total = jnp.float32(0.0)
    off = 0
    for c in c_list:
        num_h = jnp.sum(wnum[off:off + c])
        den_h = jnp.sum(wden[off:off + c])
        # Guard the all-ignored case (PyTorch would produce NaN: 0/0).
        total = total + jnp.where(
            den_h > 0, num_h / jnp.where(den_h > 0, den_h, 1.0), 0.0)
        off += c
    return total


def compute_class_weights(anneal_factor=0.0):
    weights = []
    for prop in DATA_PROP:
        annealed = (np.asarray(prop, np.float32) + EPS) ** anneal_factor
        weights.append(jnp.asarray(annealed / np.sum(annealed), jnp.float32))
    return weights


def multi_head_clf_loss(pred_list, target, cls_weights):
    """pred_list: list of (N, C_i) logits; target: (N, n_tasks) int labels."""
    c_list = tuple(int(p.shape[1]) for p in pred_list)
    n_tasks = len(c_list)
    if target.ndim == 1:
        target = target[:, None]
    n = int(target.shape[0])

    # Batch tile: whole (8-rounded) batch for tiny N, capped at MAX_TILE_N rows.
    tile_n = min(MAX_TILE_N, _round_up(max(n, 1), 8))
    n_tiles = -(-n // tile_n)
    n_cores = _num_tensorcores()
    n_split = n_cores if (n_cores > 1 and n_tiles >= n_cores) else 1
    tiles_per_split = -(-n_tiles // n_split)
    n_pad = n_split * tiles_per_split * tile_n

    offsets = np.cumsum([0] + list(c_list[:-1])).astype(np.int32)

    # Keep the caller's float dtype in HBM (bf16 stays bf16; kernel upcasts).
    cat_dtype = jnp.result_type(*[p.dtype for p in pred_list])
    if cat_dtype not in (jnp.bfloat16, jnp.float16, jnp.float32):
        cat_dtype = jnp.float32
    pred_cat = jnp.concatenate([p.astype(cat_dtype) for p in pred_list], axis=1)

    tgt = target.astype(jnp.int32)
    tgt_global = jnp.where(tgt == IGNORE_INDEX, jnp.int32(-1),
                           tgt + jnp.asarray(offsets)[None, :])
    tgt_globalf = tgt_global.astype(jnp.float32)   # -1 never matches a column

    if n_pad > n:
        pred_cat = jnp.pad(pred_cat, ((0, n_pad - n), (0, 0)))
        tgt_globalf = jnp.pad(tgt_globalf, ((0, n_pad - n), (0, 0)),
                              constant_values=-1.0)

    w_cat = jnp.concatenate([jnp.asarray(w, jnp.float32) for w in cls_weights])

    return _run_packed(pred_cat, tgt_globalf, w_cat, c_list, tile_n,
                       tiles_per_split)


def reference_loss(pred_list, target, cls_weights):
    total = jnp.float32(0.0)
    for i, p in enumerate(pred_list):
        t = target[:, i]
        valid = (t != IGNORE_INDEX).astype(jnp.float32)
        t_safe = jnp.clip(t, 0, p.shape[1] - 1)
        logp = jax.nn.log_softmax(p.astype(jnp.float32), axis=-1)
        lp = jnp.take_along_axis(logp, t_safe[:, None], axis=1)[:, 0]
        w = jnp.asarray(cls_weights[i])[t_safe]
        total = total + jnp.sum(valid * (-w * lp)) / jnp.sum(valid * w)
    return total


if __name__ == "__main__":
    key = jax.random.PRNGKey(0)
    N = 8
    C_LIST = [len(p) for p in DATA_PROP]   # [4, 7, 9, 13, 4]
    n_tasks = len(C_LIST)

    # deterministic "parameters": manual class weights, anneal_factor=0
    cls_weights = compute_class_weights(anneal_factor=0.0)

    keys = jax.random.split(key, 2 * n_tasks)
    pred_list = []
    tgt_cols = []
    for i, c_i in enumerate(C_LIST):
        pred_list.append(jax.random.normal(keys[2 * i], (N, c_i), jnp.float32))
        tgt_cols.append(jax.random.randint(keys[2 * i + 1], (N,), 0, c_i))
    target = jnp.stack(tgt_cols, axis=1)            # (N, n_tasks)
    target = target.at[0, 1].set(IGNORE_INDEX)      # exercise ignore_index path

    loss = jax.block_until_ready(multi_head_clf_loss(pred_list, target, cls_weights))
    ref = jax.block_until_ready(reference_loss(pred_list, target, cls_weights))
    assert jnp.allclose(loss, ref, rtol=1e-5, atol=1e-5), (loss, ref)
    print("KERNEL_OK")
</pallas_src>

<mosaic_0001>
module attributes {stable_mosaic.version = 11 : i64} {
  func.func @kernel(%arg0: i32, %arg1: i32, %arg2: memref<8x37xf32, #tpu.memory_space<vmem>>, %arg3: memref<8x5xf32, #tpu.memory_space<vmem>>, %arg4: memref<1x2x37xf32, #tpu.memory_space<vmem>>) attributes {dimension_semantics = [#tpu.dimension_semantics<parallel>, #tpu.dimension_semantics<arbitrary>], iteration_bounds = array<i64: 1, 1>, scalar_prefetch = 0 : i64, scratch_operands = 0 : i64, tpu.core_type = #tpu.core_type<tc>, window_params = [{transform_indices = @transform_0, window_bounds = array<i64: 8, 37>}, {transform_indices = @transform_1, window_bounds = array<i64: 8, 5>}, {transform_indices = @transform_2, window_bounds = array<i64: 1, 2, 37>}]} {
    %c0_i32 = arith.constant 0 : i32
    %0 = arith.cmpi eq, %arg1, %c0_i32 : i32
    %1 = arith.extui %0 : i1 to i32
    %c0_i32_0 = arith.constant 0 : i32
    %2 = arith.cmpi ne, %1, %c0_i32_0 : i32
    scf.if %2 {
      %cst_26 = arith.constant 0.000000e+00 : f32
      %84 = vector.broadcast %cst_26 : f32 to vector<1x2x37xf32>
      %c0_27 = arith.constant 0 : index
      %c0_28 = arith.constant 0 : index
      %c0_29 = arith.constant 0 : index
      %85 = vector.load %arg4[%c0_27, %c0_28, %c0_29] : memref<1x2x37xf32, #tpu.memory_space<vmem>>, vector<1x2x37xf32>
      tpu.vector_store %arg4[%c0_27, %c0_28, %c0_29], %84 {strides = array<i32>} : memref<1x2x37xf32, #tpu.memory_space<vmem>>, vector<1x2x37xf32>,
    } else {
    }
    %c0 = arith.constant 0 : index
    %c0_1 = arith.constant 0 : index
    %3 = vector.load %arg2[%c0, %c0_1] : memref<8x37xf32, #tpu.memory_space<vmem>>, vector<8x37xf32>
    %c0_2 = arith.constant 0 : index
    %c0_3 = arith.constant 0 : index
    %4 = vector.load %arg3[%c0_2, %c0_3] : memref<8x5xf32, #tpu.memory_space<vmem>>, vector<8x5xf32>
    %5 = tpu.iota {dimensions = array<i32: 1>} : vector<1x37xi32>
    %6 = tpu.iota {dimensions = array<i32: 0>} : vector<37x1xi32>
    %7 = tpu.iota {dimensions = array<i32: 0>} : vector<5x37xi32>
    %c0_i32_4 = arith.constant 0 : i32
    %8 = vector.broadcast %c0_i32_4 : i32 to vector<1x37xi32>
    %c0_i32_5 = arith.constant 0 : i32
    %9 = vector.broadcast %c0_i32_5 : i32 to vector<37x1xi32>
    %c4_i32 = arith.constant 4 : i32
    %10 = vector.broadcast %c4_i32 : i32 to vector<1x37xi32>
    %11 = arith.cmpi sge, %5, %10 : vector<1x37xi32>
    %12 = arith.extui %11 : vector<1x37xi1> to vector<1x37xi32>
    %13 = arith.addi %8, %12 : vector<1x37xi32>
    %c4_i32_6 = arith.constant 4 : i32
    %14 = vector.broadcast %c4_i32_6 : i32 to vector<37x1xi32>
    %15 = arith.cmpi sge, %6, %14 : vector<37x1xi32>
    %16 = arith.extui %15 : vector<37x1xi1> to vector<37x1xi32>
    %17 = arith.addi %9, %16 : vector<37x1xi32>
    %c11_i32 = arith.constant 11 : i32
    %18 = vector.broadcast %c11_i32 : i32 to vector<1x37xi32>
    %19 = arith.cmpi sge, %5, %18 : vector<1x37xi32>
    %20 = arith.extui %19 : vector<1x37xi1> to vector<1x37xi32>
    %21 = arith.addi %13, %20 : vector<1x37xi32>
    %c11_i32_7 = arith.constant 11 : i32
    %22 = vector.broadcast %c11_i32_7 : i32 to vector<37x1xi32>
    %23 = arith.cmpi sge, %6, %22 : vector<37x1xi32>
    %24 = arith.extui %23 : vector<37x1xi1> to vector<37x1xi32>
    %25 = arith.addi %17, %24 : vector<37x1xi32>
    %c20_i32 = arith.constant 20 : i32
    %26 = vector.broadcast %c20_i32 : i32 to vector<1x37xi32>
    %27 = arith.cmpi sge, %5, %26 : vector<1x37xi32>
    %28 = arith.extui %27 : vector<1x37xi1> to vector<1x37xi32>
    %29 = arith.addi %21, %28 : vector<1x37xi32>
    %c20_i32_8 = arith.constant 20 : i32
    %30 = vector.broadcast %c20_i32_8 : i32 to vector<37x1xi32>
    %31 = arith.cmpi sge, %6, %30 : vector<37x1xi32>
    %32 = arith.extui %31 : vector<37x1xi1> to vector<37x1xi32>
    %33 = arith.addi %25, %32 : vector<37x1xi32>
    %c33_i32 = arith.constant 33 : i32
    %34 = vector.broadcast %c33_i32 : i32 to vector<1x37xi32>
    %35 = arith.cmpi sge, %5, %34 : vector<1x37xi32>
    %36 = arith.extui %35 : vector<1x37xi1> to vector<1x37xi32>
    %37 = arith.addi %29, %36 : vector<1x37xi32>
    %c33_i32_9 = arith.constant 33 : i32
    %38 = vector.broadcast %c33_i32_9 : i32 to vector<37x1xi32>
    %39 = arith.cmpi sge, %6, %38 : vector<37x1xi32>
    %40 = arith.extui %39 : vector<37x1xi1> to vector<37x1xi32>
    %41 = arith.addi %33, %40 : vector<37x1xi32>
    %42 = vector.broadcast %41 : vector<37x1xi32> to vector<37x37xi32>
    %43 = vector.broadcast %37 : vector<1x37xi32> to vector<37x37xi32>
    %44 = arith.cmpi eq, %42, %43 : vector<37x37xi32>
    %45 = arith.extui %44 : vector<37x37xi1> to vector<37x37xi32>
    %46 = arith.sitofp %45 : vector<37x37xi32> to vector<37x37xf32>
    %47 = vector.broadcast %37 : vector<1x37xi32> to vector<5x37xi32>
    %48 = arith.cmpi eq, %7, %47 : vector<5x37xi32>
    %49 = arith.extui %48 : vector<5x37xi1> to vector<5x37xi32>
    %50 = arith.sitofp %49 : vector<5x37xi32> to vector<5x37xf32>
    %51 = arith.sitofp %5 : vector<1x37xi32> to vector<1x37xf32>
    %cst = arith.constant dense<0xFF800000> : vector<8xf32>
    %52 = vector.multi_reduction <maximumf>, %3, %cst [1] : vector<8x37xf32> to vector<8xf32>
    %53 = vector.shape_cast %52 : vector<8xf32> to vector<8x1xf32>
    %54 = vector.broadcast %53 : vector<8x1xf32> to vector<8x37xf32>
    %55 = arith.subf %3, %54 : vector<8x37xf32>
    %56 = math.exp %55 : vector<8x37xf32>
    %cst_10 = arith.constant dense<0.000000e+00> : vector<8x37xf32>
    %57 = tpu.matmul %56, %46, %cst_10 {dimension_numbers = #tpu.dot_dimension_numbers<[1], [0], [0], [1], [0, 0, 1, 1], [], []>, precision = #tpu.contract_precision<fp32>} : vector<8x37xf32>, vector<37x37xf32>, vector<8x37xf32> -> vector<8x37xf32>
    %cst_11 = arith.constant 9.99999991E-38 : f32
    %58 = vector.broadcast %cst_11 : f32 to vector<8x37xf32>
    %59 = arith.maximumf %57, %58 : vector<8x37xf32>
    %60 = math.log %59 : vector<8x37xf32>
    %61 = arith.subf %60, %55 : vector<8x37xf32>
    %cst_12 = arith.constant dense<0.000000e+00> : vector<8x37xf32>
    %62 = tpu.matmul %4, %50, %cst_12 {dimension_numbers = #tpu.dot_dimension_numbers<[1], [0], [0], [1], [0, 0, 1, 1], [], []>} : vector<8x5xf32>, vector<5x37xf32>, vector<8x37xf32> -> vector<8x37xf32>
    %63 = vector.broadcast %51 : vector<1x37xf32> to vector<8x37xf32>
    %64 = arith.cmpf oeq, %62, %63 : vector<8x37xf32>
    %65 = arith.extui %64 : vector<8x37xi1> to vector<8x37xi32>
    %66 = arith.sitofp %65 : vector<8x37xi32> to vector<8x37xf32>
    %c0_13 = arith.constant 0 : index
    %c0_14 = arith.constant 0 : index
    %c0_15 = arith.constant 0 : index
    %67 = vector.load %arg4[%c0_13, %c0_14, %c0_15] : memref<1x2x37xf32, #tpu.memory_space<vmem>>, vector<1x1x37xf32>
    %68 = vector.shape_cast %67 : vector<1x1x37xf32> to vector<1x37xf32>
    %69 = arith.mulf %66, %61 : vector<8x37xf32>
    %cst_16 = arith.constant dense<0.000000e+00> : vector<37xf32>
    %70 = vector.multi_reduction <add>, %69, %cst_16 [0] : vector<8x37xf32> to vector<37xf32>
    %71 = vector.shape_cast %70 : vector<37xf32> to vector<1x37xf32>
    %72 = arith.addf %68, %71 : vector<1x37xf32>
    %c0_17 = arith.constant 0 : index
    %c0_18 = arith.constant 0 : index
    %c0_19 = arith.constant 0 : index
    %73 = vector.load %arg4[%c0_17, %c0_18, %c0_19] : memref<1x2x37xf32, #tpu.memory_space<vmem>>, vector<1x1x37xf32>
    %74 = vector.shape_cast %73 : vector<1x1x37xf32> to vector<1x37xf32>
    %75 = vector.shape_cast %72 : vector<1x37xf32> to vector<1x1x37xf32>
    tpu.vector_store %arg4[%c0_17, %c0_18, %c0_19], %75 {strides = array<i32>} : memref<1x2x37xf32, #tpu.memory_space<vmem>>, vector<1x1x37xf32>,
    %c0_20 = arith.constant 0 : index
    %c1 = arith.constant 1 : index
    %c0_21 = arith.constant 0 : index
    %76 = vector.load %arg4[%c0_20, %c1, %c0_21] : memref<1x2x37xf32, #tpu.memory_space<vmem>>, vector<1x1x37xf32>
    %77 = vector.shape_cast %76 : vector<1x1x37xf32> to vector<1x37xf32>
    %cst_22 = arith.constant dense<0.000000e+00> : vector<37xf32>
    %78 = vector.multi_reduction <add>, %66, %cst_22 [0] : vector<8x37xf32> to vector<37xf32>
    %79 = vector.shape_cast %78 : vector<37xf32> to vector<1x37xf32>
    %80 = arith.addf %77, %79 : vector<1x37xf32>
    %c0_23 = arith.constant 0 : index
    %c1_24 = arith.constant 1 : index
    %c0_25 = arith.constant 0 : index
    %81 = vector.load %arg4[%c0_23, %c1_24, %c0_25] : memref<1x2x37xf32, #tpu.memory_space<vmem>>, vector<1x1x37xf32>
    %82 = vector.shape_cast %81 : vector<1x1x37xf32> to vector<1x37xf32>
    %83 = vector.shape_cast %80 : vector<1x37xf32> to vector<1x1x37xf32>
    tpu.vector_store %arg4[%c0_23, %c1_24, %c0_25], %83 {strides = array<i32>} : memref<1x2x37xf32, #tpu.memory_space<vmem>>, vector<1x1x37xf32>,
    return
  }
  func.func @transform_0(%arg0: i32, %arg1: i32) -> (i32, i32) {
    %c1_i32 = arith.constant 1 : i32
    %0 = arith.muli %arg0, %c1_i32 : i32
    %1 = arith.addi %0, %arg1 : i32
    %c0_i32 = arith.constant 0 : i32
    %c0_i32_0 = arith.constant 0 : i32
    return %1, %c0_i32 : i32, i32
  }
  func.func @transform_1(%arg0: i32, %arg1: i32) -> (i32, i32) {
    %c1_i32 = arith.constant 1 : i32
    %0 = arith.muli %arg0, %c1_i32 : i32
    %1 = arith.addi %0, %arg1 : i32
    %c0_i32 = arith.constant 0 : i32
    %c0_i32_0 = arith.constant 0 : i32
    return %1, %c0_i32 : i32, i32
  }
  func.func @transform_2(%arg0: i32, %arg1: i32) -> (i32, i32, i32) {
    %c0_i32 = arith.constant 0 : i32
    %c0_i32_0 = arith.constant 0 : i32
    %c0_i32_1 = arith.constant 0 : i32
    return %arg0, %c0_i32, %c0_i32_0 : i32, i32, i32
  }
}

</mosaic_0001>

<llo_original>
// kernel: _run_packed.1
$region0: #{_run_packed.1}
  #allocation0 [shape = 'u32[]', space=smem, size = 0x4, offset = 0x4, fixed_abs, tag = 'smem constant byte address 0x4 - core index']
  #allocation1 [shape = 'u32[144,128]{1,0:T(1,128)}', space=vmem, size = 0x12000, scoped, tag = 'internal scratch']
  %s0 = inlined_call_operand.hbm [shape: f32[8,37], index: 0, kind: input, shape index: {}]
  %s1 = inlined_call_operand.hbm [shape: f32[8,5], index: 1, kind: input, shape index: {}]
  %s2 = inlined_call_operand.vmem [shape: f32[1,2,37], index: 2, kind: output, shape index: {}]
  %s3 = sld [smem:[#allocation0]]
  $region30: #{_run_packed.1} parent=0
    _
  %s5 = ssub.s32 1, %s3
  %s6 = scalar_select 0, %s5, %s3
  $region1: #{_run_packed.1} parent=0
    #allocation2 [shape = 'u8[4096]{0}', space=vmem, size = 0x1000, scoped, tag = 'input window, operand 0, single buffered']
    #allocation3 [shape = 's32[1]{0}', space=sflag, size = 0x4, scoped, tag = 'scoped memory for _run_packed.1']
    #allocation4 [shape = 'u8[4096]{0}', space=vmem, size = 0x1000, scoped, tag = 'input window, operand 1, single buffered']
    #allocation5 [shape = 's32[1]{0}', space=sflag, size = 0x4, scoped, tag = 'scoped memory for _run_packed.1']
    %7 = vsyncpa [#allocation3], 0
    %8 = vsyncpa [#allocation5], 0
    // Predicated region
    $region2: #{_run_packed.1} parent=1 // pred_check
      _
    $region3: #{_run_packed.1} parent=1 // pred_check_branch
      %10 = sbr.rel (0) target = $region5
    $region4: #{_run_packed.1} parent=1 // pred_region
      %s11 = sadd.s32 0, 0
      %s13 = ssub.s32 128, 128
      %14 = vsyncadd [#allocation3], %s13
      %s15 = smul.addr %s11, 128
      %s16 = scalar_lea.hbm %s0, %s15
      %s18 = sshll.u32 [#allocation2], 4
      %s19 = int_to_ptr.vmem [resolvable:$true] %s18
      %21 = dma.hbm_to_vmem [thread:$0]  %s16, 128, %s19, [#allocation3]
    $region5: #{_run_packed.1} parent=1 // pred_fallthru
      _
    // Predicated region
    $region6: #{_run_packed.1} parent=1 // pred_check
      _
    $region7: #{_run_packed.1} parent=1 // pred_check_branch
      %23 = sbr.rel (0) target = $region9
    $region8: #{_run_packed.1} parent=1 // pred_region
      %s24 = sadd.s32 0, 0
      %s26 = ssub.s32 128, 128
      %27 = vsyncadd [#allocation5], %s26
      %s28 = smul.addr %s24, 128
      %s29 = scalar_lea.hbm %s1, %s28
      %s31 = sshll.u32 [#allocation4], 4
      %s32 = int_to_ptr.vmem [resolvable:$true] %s31
      %34 = dma.hbm_to_vmem [thread:$0]  %s29, 128, %s32, [#allocation5]
    $region9: #{_run_packed.1} parent=1 // pred_fallthru
      _
    // Predicated region
    $region10: #{_run_packed.1} parent=1 // pred_check
      _
    $region11: #{_run_packed.1} parent=1 // pred_check_branch
      %36 = sbr.rel (0) target = $region13
    $region12: #{_run_packed.1} parent=1 // pred_region
      %37 = dma.done [#allocation3], 128
    $region13: #{_run_packed.1} parent=1 // pred_fallthru
      _
    // Predicated region
    $region14: #{_run_packed.1} parent=1 // pred_check
      _
    $region15: #{_run_packed.1} parent=1 // pred_check_branch
      %39 = sbr.rel (0) target = $region17
    $region16: #{_run_packed.1} parent=1 // pred_region
      %40 = dma.done [#allocation5], 128
    $region17: #{_run_packed.1} parent=1 // pred_fallthru
      _
    %s41 = sadd.s32 0, 0
    %s42 = sadd.s32 0, 0
    %p43 = scmp.eq.s32.totalorder 0, 0
    // Predicated region
    $region18: #{_run_packed.1} parent=1 // pred_check
      %p44 = pneg %p43
    $region19: #{_run_packed.1} parent=1 // pred_check_branch
      %46 = sbr.rel (%p44) target = $region21
    $region20: #{_run_packed.1} parent=1 // pred_region
      %vm47 = vcmask 295936
      %48 = vst.msk [vmem:[%s2] sm:$0x3] %vm47, 0.0
    $region21: #{_run_packed.1} parent=1 // pred_fallthru
      _
    %v49 = vld [vmem:[#allocation2] sm:$0xff]
    %v50 = vld [vmem:[#allocation4] sm:$0xff]
    %v51 = vlaneseq
    %v52 = vand.u32 %v51, 127
    %v53 = vlaneseq
    %v54 = vshrl.u32 %v53, 7
    %v55 = vadd.s32 %v54, 8
    %v56 = vadd.s32 %v54, 16
    %v57 = vadd.s32 %v54, 24
    %v58 = vadd.s32 %v54, 32
    %vm59 = vcmp.ge.s32.totalorder %v52, 4
    %v60 = vsel %vm59, 1, 0
    %vm61 = vcmp.ge.s32.totalorder %v54, 4
    %vm62 = vcmp.ge.s32.totalorder %v55, 4
    %vm63 = vcmp.ge.s32.totalorder %v56, 4
    %vm64 = vcmp.ge.s32.totalorder %v57, 4
    %vm65 = vcmp.ge.s32.totalorder %v58, 4
    %v66 = vsel %vm61, 1, 0
    %v67 = vsel %vm62, 1, 0
    %v68 = vsel %vm63, 1, 0
    %v69 = vsel %vm64, 1, 0
    %v70 = vsel %vm65, 1, 0
    %vm71 = vcmp.ge.s32.totalorder %v52, 11
    %v72 = vsel %vm71, 1, 0
    %v73 = vadd.s32 %v60, %v72
    %vm74 = vcmp.ge.s32.totalorder %v54, 11
    %vm75 = vcmp.ge.s32.totalorder %v55, 11
    %vm76 = vcmp.ge.s32.totalorder %v56, 11
    %vm77 = vcmp.ge.s32.totalorder %v57, 11
    %vm78 = vcmp.ge.s32.totalorder %v58, 11
    %v79 = vsel %vm74, 1, 0
    %v80 = vsel %vm75, 1, 0
    %v81 = vsel %vm76, 1, 0
    %v82 = vsel %vm77, 1, 0
    %v83 = vsel %vm78, 1, 0
    %v84 = vadd.s32 %v66, %v79
    %v85 = vadd.s32 %v67, %v80
    %v86 = vadd.s32 %v68, %v81
    %v87 = vadd.s32 %v69, %v82
    %v88 = vadd.s32 %v70, %v83
    %vm89 = vcmp.ge.s32.totalorder %v52, 20
    %v90 = vsel %vm89, 1, 0
    %v91 = vadd.s32 %v73, %v90
    %vm92 = vcmp.ge.s32.totalorder %v54, 20
    %vm93 = vcmp.ge.s32.totalorder %v55, 20
    %vm94 = vcmp.ge.s32.totalorder %v56, 20
    %vm95 = vcmp.ge.s32.totalorder %v57, 20
    %vm96 = vcmp.ge.s32.totalorder %v58, 20
    %v97 = vsel %vm92, 1, 0
    %v98 = vsel %vm93, 1, 0
    %v99 = vsel %vm94, 1, 0
    %v100 = vsel %vm95, 1, 0
    %v101 = vsel %vm96, 1, 0
    %v102 = vadd.s32 %v84, %v97
    %v103 = vadd.s32 %v85, %v98
    %v104 = vadd.s32 %v86, %v99
    %v105 = vadd.s32 %v87, %v100
    %v106 = vadd.s32 %v88, %v101
    %vm107 = vcmp.ge.s32.totalorder %v52, 33
    %v108 = vsel %vm107, 1, 0
    %v109 = vadd.s32 %v91, %v108
    %vm110 = vcmp.ge.s32.totalorder %v54, 33
    %vm111 = vcmp.ge.s32.totalorder %v55, 33
    %vm112 = vcmp.ge.s32.totalorder %v56, 33
    %vm113 = vcmp.ge.s32.totalorder %v57, 33
    %vm114 = vcmp.ge.s32.totalorder %v58, 33
    %v115 = vsel %vm110, 1, 0
    %v116 = vsel %vm111, 1, 0
    %v117 = vsel %vm112, 1, 0
    %v118 = vsel %vm113, 1, 0
    %v119 = vsel %vm114, 1, 0
    %v120 = vadd.s32 %v102, %v115
    %v121 = vadd.s32 %v103, %v116
    %v122 = vadd.s32 %v104, %v117
    %v123 = vadd.s32 %v105, %v118
    %v124 = vadd.s32 %v106, %v119
    %vm125 = vcmp.eq.s32.totalorder %v120, %v109
    %vm126 = vcmp.eq.s32.totalorder %v121, %v109
    %vm127 = vcmp.eq.s32.totalorder %v122, %v109
    %vm128 = vcmp.eq.s32.totalorder %v123, %v109
    %vm129 = vcmp.eq.s32.totalorder %v124, %v109
    %v130 = vsel %vm125, 1, 0
    %v131 = vsel %vm126, 1, 0
    %v132 = vsel %vm127, 1, 0
    %v133 = vsel %vm128, 1, 0
    %v134 = vsel %vm129, 1, 0
    %v135 = vcvt.s32.f32 %v130
    %v136 = vcvt.s32.f32 %v131
    %v137 = vcvt.s32.f32 %v132
    %v138 = vcvt.s32.f32 %v133
    %v139 = vcvt.s32.f32 %v134
    %vm140 = vcmp.eq.s32.totalorder %v54, %v109
    %v141 = vsel %vm140, 1, 0
    %v142 = vcvt.s32.f32 %v141
    %v143 = vcvt.s32.f32 %v52
    %vm144 = vcmask 302080
    %v145 = vsel %vm144, %v49, -inf
    %146 = vmax.xlane.f32.xlu0 %v145
    %v147 = vpop.xlane.xlu0 %146
    %v148 = vsub.f32 %v49, %v147
    %v149 = vmul.f32 %v148, 1.442695
    %v150 = vpow.pop %v149
    %v152 = vsel %vm144, %v150, 0
    %vm154 = vcmask 1044480
    %v156 = vsel %vm154, %v139, 0
    %158 = vmatprep.subr.mxu0 0.0
    %v159 = vand.u32 %v135, 4294901760
    %160 = vmatpush1.msra.mxu0 %v159
    %161 = vmatprep.subr.mxu0 0.0
    %v162 = vand.u32 %v136, 4294901760
    %163 = vmatpush1.msra.mxu0 %v162
    %164 = vmatprep.subr.mxu0 0.0
    %v165 = vand.u32 %v137, 4294901760
    %166 = vmatpush1.msra.mxu0 %v165
    %167 = vmatprep.subr.mxu0 0.0
    %v168 = vand.u32 %v138, 4294901760
    %169 = vmatpush1.msra.mxu0 %v168
    %170 = vmatprep.subr.mxu0 0.0
    %v171 = vand.u32 %v156, 4294901760
    %172 = vmatpush1.msra.mxu0 %v171
    %173 = vmatprep.subr.mxu0 0.0
    %174 = vmatpush1.msra.mxu0 0.0
    %175 = vmatprep.subr.mxu0 0.0
    %176 = vmatpush1.msra.mxu0 0.0
    %177 = vmatprep.subr.mxu0 0.0
    %178 = vmatpush1.msra.mxu0 0.0
    %179 = vmatprep.subr.mxu0 0.0
    %180 = vmatpush1.msra.mxu0 0.0
    %181 = vmatprep.subr.mxu0 0.0
    %182 = vmatpush1.msra.mxu0 0.0
    %183 = vmatprep.subr.mxu0 0.0
    %184 = vmatpush1.msra.mxu0 0.0
    %185 = vmatprep.subr.mxu0 0.0
    %186 = vmatpush1.msra.mxu0 0.0
    %187 = vmatprep.subr.mxu0 0.0
    %188 = vmatpush1.msra.mxu0 0.0
    %189 = vmatprep.subr.mxu0 0.0
    %190 = vmatpush1.msra.mxu0 0.0
    %191 = vmatprep.subr.mxu0 0.0
    %192 = vmatpush1.msra.mxu0 0.0
    %193 = vmatprep.subr.mxu0 0.0
    %194 = vmatpush1.msra.mxu0 0.0
    %195 = vmatprep.subr.mxu0 0.0
    %196 = vmatpush1.msra.mxu0 0.0
    %197 = vmatprep.subr.mxu0 0.0
    %198 = vmatpush1.msra.mxu0 0.0
    %199 = vmatprep.subr.mxu0 0.0
    %200 = vmatpush1.msra.mxu0 0.0
    %201 = vmatprep.subr.mxu0 0.0
    %202 = vmatpush1.msra.mxu0 0.0
    %203 = vmatprep.subr.mxu0 0.0
    %204 = vmatpush1.msra.mxu0 0.0
    %205 = vmatprep.subr.mxu0 0.0
    %206 = vmatpush1.msra.mxu0 0.0
    %207 = vmatprep.subr.mxu0 0.0
    %208 = vmatpush1.msra.mxu0 0.0
    %209 = vmatprep.subr.mxu0 0.0
    %210 = vmatpush1.msra.mxu0 0.0
    %211 = vmatprep.subr.mxu0 0.0
    %212 = vmatpush1.msra.mxu0 0.0
    %213 = vmatprep.subr.mxu0 0.0
    %214 = vmatpush1.msra.mxu0 0.0
    %215 = vmatprep.subr.mxu0 0.0
    %216 = vmatpush1.msra.mxu0 0.0
    %217 = vmatprep.subr.mxu0 0.0
    %218 = vmatpush1.msra.mxu0 0.0
    %219 = vmatprep.subr.mxu0 0.0
    %220 = vmatpush1.msra.mxu0 0.0
    %221 = vmatprep.subr.mxu0 0.0
    %222 = vmatpush1.msra.mxu0 0.0
    %223 = vmatprep.subr.mxu0 0.0
    %224 = vmatpush1.msra.mxu0 0.0
    %225 = vmatprep.subr.mxu0 0.0
    %226 = vmatpush1.msra.mxu0 0.0
    %227 = vmatprep.mubr.f32.mxu0 0.0
    %v228 = vand.u32 %v152, 4294901760
    %v229 = vsub.f32 %v152, %v228
    %v230 = vand.u32 %v229, 4294901760
    %v231 = vsub.f32 %v229, %v230
    %v232 = vand.u32 %v231, 4294901760
    %233 = vmatmul.mubr.f32.gmra.mrb[0].mxu0 %v232
    %v234 = vpop.f32.mrb[0].mxu0
    %v235 = vadd.f32 0.0, %v234
    %v236 = vpop.f32.mrb[0].mxu0
    %237 = vdwg.mxu0
    %238 = vmatprep.subr.mxu0 0.0
    %v239 = vand.u32 %v135, 4294901760
    %v240 = vsub.f32 %v135, %v239
    %v241 = vand.u32 %v240, 4294901760
    %v242 = vsub.f32 %v240, %v241
    %v243 = vand.u32 %v242, 4294901760
    %244 = vmatpush1.msra.mxu0 %v243
    %245 = vmatprep.subr.mxu0 0.0
    %v246 = vand.u32 %v136, 4294901760
    %v247 = vsub.f32 %v136, %v246
    %v248 = vand.u32 %v247, 4294901760
    %v249 = vsub.f32 %v247, %v248
    %v250 = vand.u32 %v249, 4294901760
    %251 = vmatpush1.msra.mxu0 %v250
    %252 = vmatprep.subr.mxu0 0.0
    %v253 = vand.u32 %v137, 4294901760
    %v254 = vsub.f32 %v137, %v253
    %v255 = vand.u32 %v254, 4294901760
    %v256 = vsub.f32 %v254, %v255
    %v257 = vand.u32 %v256, 4294901760
    %258 = vmatpush1.msra.mxu0 %v257
    %259 = vmatprep.subr.mxu0 0.0
    %v260 = vand.u32 %v138, 4294901760
    %v261 = vsub.f32 %v138, %v260
    %v262 = vand.u32 %v261, 4294901760
    %v263 = vsub.f32 %v261, %v262
    %v264 = vand.u32 %v263, 4294901760
    %265 = vmatpush1.msra.mxu0 %v264
    %266 = vmatprep.subr.mxu0 0.0
    %v267 = vand.u32 %v156, 4294901760
    %v268 = vsub.f32 %v156, %v267
    %v269 = vand.u32 %v268, 4294901760
    %v270 = vsub.f32 %v268, %v269
    %v271 = vand.u32 %v270, 4294901760
    %272 = vmatpush1.msra.mxu0 %v271
    %273 = vmatprep.subr.mxu0 0.0
    %274 = vmatpush1.msra.mxu0 0.0
    %275 = vmatprep.subr.mxu0 0.0
    %276 = vmatpush1.msra.mxu0 0.0
    %277 = vmatprep.subr.mxu0 0.0
    %278 = vmatpush1.msra.mxu0 0.0
    %279 = vmatprep.subr.mxu0 0.0
    %280 = vmatpush1.msra.mxu0 0.0
    %281 = vmatprep.subr.mxu0 0.0
    %282 = vmatpush1.msra.mxu0 0.0
    %283 = vmatprep.subr.mxu0 0.0
    %284 = vmatpush1.msra.mxu0 0.0
    %285 = vmatprep.subr.mxu0 0.0
    %286 = vmatpush1.msra.mxu0 0.0
    %287 = vmatprep.subr.mxu0 0.0
    %288 = vmatpush1.msra.mxu0 0.0
    %289 = vmatprep.subr.mxu0 0.0
    %290 = vmatpush1.msra.mxu0 0.0
    %291 = vmatprep.subr.mxu0 0.0
    %292 = vmatpush1.msra.mxu0 0.0
    %293 = vmatprep.subr.mxu0 0.0
    %294 = vmatpush1.msra.mxu0 0.0
    %295 = vmatprep.subr.mxu0 0.0
    %296 = vmatpush1.msra.mxu0 0.0
    %297 = vmatprep.subr.mxu0 0.0
    %298 = vmatpush1.msra.mxu0 0.0
    %299 = vmatprep.subr.mxu0 0.0
    %300 = vmatpush1.msra.mxu0 0.0
    %301 = vmatprep.subr.mxu0 0.0
    %302 = vmatpush1.msra.mxu0 0.0
    %303 = vmatprep.subr.mxu0 0.0
    %304 = vmatpush1.msra.mxu0 0.0
    %305 = vmatprep.subr.mxu0 0.0
    %306 = vmatpush1.msra.mxu0 0.0
    %307 = vmatprep.subr.mxu0 0.0
    %308 = vmatpush1.msra.mxu0 0.0
    %309 = vmatprep.subr.mxu0 0.0
    %310 = vmatpush1.msra.mxu0 0.0
    %311 = vmatprep.subr.mxu0 0.0
    %312 = vmatpush1.msra.mxu0 0.0
    %313 = vmatprep.subr.mxu0 0.0
    %314 = vmatpush1.msra.mxu0 0.0
    %315 = vmatprep.subr.mxu0 0.0
    %316 = vmatpush1.msra.mxu0 0.0
    %317 = vmatprep.subr.mxu0 0.0
    %318 = vmatpush1.msra.mxu0 0.0
    %319 = vmatprep.subr.mxu0 0.0
    %320 = vmatpush1.msra.mxu0 0.0
    %321 = vmatprep.subr.mxu0 0.0
    %322 = vmatpush1.msra.mxu0 0.0
    %323 = vmatprep.subr.mxu0 0.0
    %324 = vmatpush1.msra.mxu0 0.0
    %325 = vmatprep.subr.mxu0 0.0
    %326 = vmatpush1.msra.mxu0 0.0
    %327 = vmatprep.mubr.f32.mxu0 0.0
    %v328 = vand.u32 %v152, 4294901760
    %329 = vmatmul.mubr.f32.gmra.mrb[0].mxu0 %v328
    %v330 = vpop.f32.mrb[0].mxu0
    %v331 = vadd.f32 %v235, %v330
    %v332 = vpop.f32.mrb[0].mxu0
    %333 = vdwg.mxu0
    %334 = vmatprep.subr.mxu0 0.0
    %v335 = vand.u32 %v135, 4294901760
    %v336 = vsub.f32 %v135, %v335
    %337 = vmatpush1.msra.mxu0 %v336
    %338 = vmatprep.subr.mxu0 0.0
    %v339 = vand.u32 %v136, 4294901760
    %v340 = vsub.f32 %v136, %v339
    %341 = vmatpush1.msra.mxu0 %v340
    %342 = vmatprep.subr.mxu0 0.0
    %v343 = vand.u32 %v137, 4294901760
    %v344 = vsub.f32 %v137, %v343
    %345 = vmatpush1.msra.mxu0 %v344
    %346 = vmatprep.subr.mxu0 0.0
    %v347 = vand.u32 %v138, 4294901760
    %v348 = vsub.f32 %v138, %v347
    %349 = vmatpush1.msra.mxu0 %v348
    %350 = vmatprep.subr.mxu0 0.0
    %v351 = vand.u32 %v156, 4294901760
    %v352 = vsub.f32 %v156, %v351
    %353 = vmatpush1.msra.mxu0 %v352
    %354 = vmatprep.subr.mxu0 0.0
    %355 = vmatpush1.msra.mxu0 0.0
    %356 = vmatprep.subr.mxu0 0.0
    %357 = vmatpush1.msra.mxu0 0.0
    %358 = vmatprep.subr.mxu0 0.0
    %359 = vmatpush1.msra.mxu0 0.0
    %360 = vmatprep.subr.mxu0 0.0
    %361 = vmatpush1.msra.mxu0 0.0
    %362 = vmatprep.subr.mxu0 0.0
    %363 = vmatpush1.msra.mxu0 0.0
    %364 = vmatprep.subr.mxu0 0.0
    %365 = vmatpush1.msra.mxu0 0.0
    %366 = vmatprep.subr.mxu0 0.0
    %367 = vmatpush1.msra.mxu0 0.0
    %368 = vmatprep.subr.mxu0 0.0
    %369 = vmatpush1.msra.mxu0 0.0
    %370 = vmatprep.subr.mxu0 0.0
    %371 = vmatpush1.msra.mxu0 0.0
    %372 = vmatprep.subr.mxu0 0.0
    %373 = vmatpush1.msra.mxu0 0.0
    %374 = vmatprep.subr.mxu0 0.0
    %375 = vmatpush1.msra.mxu0 0.0
    %376 = vmatprep.subr.mxu0 0.0
    %377 = vmatpush1.msra.mxu0 0.0
    %378 = vmatprep.subr.mxu0 0.0
    %379 = vmatpush1.msra.mxu0 0.0
    %380 = vmatprep.subr.mxu0 0.0
    %381 = vmatpush1.msra.mxu0 0.0
    %382 = vmatprep.subr.mxu0 0.0
    %383 = vmatpush1.msra.mxu0 0.0
    %384 = vmatprep.subr.mxu0 0.0
    %385 = vmatpush1.msra.mxu0 0.0
    %386 = vmatprep.subr.mxu0 0.0
    %387 = vmatpush1.msra.mxu0 0.0
    %388 = vmatprep.subr.mxu0 0.0
    %389 = vmatpush1.msra.mxu0 0.0
    %390 = vmatprep.subr.mxu0 0.0
    %391 = vmatpush1.msra.mxu0 0.0
    %392 = vmatprep.subr.mxu0 0.0
    %393 = vmatpush1.msra.mxu0 0.0
    %394 = vmatprep.subr.mxu0 0.0
    %395 = vmatpush1.msra.mxu0 0.0
    %396 = vmatprep.subr.mxu0 0.0
    %397 = vmatpush1.msra.mxu0 0.0
    %398 = vmatprep.subr.mxu0 0.0
    %399 = vmatpush1.msra.mxu0 0.0
    %400 = vmatprep.subr.mxu0 0.0
    %401 = vmatpush1.msra.mxu0 0.0
    %402 = vmatprep.subr.mxu0 0.0
    %403 = vmatpush1.msra.mxu0 0.0
    %404 = vmatprep.subr.mxu0 0.0
    %405 = vmatpush1.msra.mxu0 0.0
    %406 = vmatprep.subr.mxu0 0.0
    %407 = vmatpush1.msra.mxu0 0.0
    %408 = vmatprep.mubr.f32.mxu0 0.0
    %v409 = vand.u32 %v152, 4294901760
    %v410 = vsub.f32 %v152, %v409
    %411 = vmatmul.mubr.f32.gmra.mrb[0].mxu0 %v410
    %v412 = vpop.f32.mrb[0].mxu0
    %v413 = vadd.f32 %v331, %v412
    %v414 = vpop.f32.mrb[0].mxu0
    %415 = vdwg.mxu0
    %416 = vmatprep.subr.mxu0 0.0
    %v417 = vand.u32 %v135, 4294901760
    %418 = vmatpush1.msra.mxu0 %v417
    %419 = vmatprep.subr.mxu0 0.0
    %v420 = vand.u32 %v136, 4294901760
    %421 = vmatpush1.msra.mxu0 %v420
    %422 = vmatprep.subr.mxu0 0.0
    %v423 = vand.u32 %v137, 4294901760
    %424 = vmatpush1.msra.mxu0 %v423
    %425 = vmatprep.subr.mxu0 0.0
    %v426 = vand.u32 %v138, 4294901760
    %427 = vmatpush1.msra.mxu0 %v426
    %428 = vmatprep.subr.mxu0 0.0
    %v429 = vand.u32 %v156, 4294901760
    %430 = vmatpush1.msra.mxu0 %v429
    %431 = vmatprep.subr.mxu0 0.0
    %432 = vmatpush1.msra.mxu0 0.0
    %433 = vmatprep.subr.mxu0 0.0
    %434 = vmatpush1.msra.mxu0 0.0
    %435 = vmatprep.subr.mxu0 0.0
    %436 = vmatpush1.msra.mxu0 0.0
    %437 = vmatprep.subr.mxu0 0.0
    %438 = vmatpush1.msra.mxu0 0.0
    %439 = vmatprep.subr.mxu0 0.0
    %440 = vmatpush1.msra.mxu0 0.0
    %441 = vmatprep.subr.mxu0 0.0
    %442 = vmatpush1.msra.mxu0 0.0
    %443 = vmatprep.subr.mxu0 0.0
    %444 = vmatpush1.msra.mxu0 0.0
    %445 = vmatprep.subr.mxu0 0.0
    %446 = vmatpush1.msra.mxu0 0.0
    %447 = vmatprep.subr.mxu0 0.0
    %448 = vmatpush1.msra.mxu0 0.0
    %449 = vmatprep.subr.mxu0 0.0
    %450 = vmatpush1.msra.mxu0 0.0
    %451 = vmatprep.subr.mxu0 0.0
    %452 = vmatpush1.msra.mxu0 0.0
    %453 = vmatprep.subr.mxu0 0.0
    %454 = vmatpush1.msra.mxu0 0.0
    %455 = vmatprep.subr.mxu0 0.0
    %456 = vmatpush1.msra.mxu0 0.0
    %457 = vmatprep.subr.mxu0 0.0
    %458 = vmatpush1.msra.mxu0 0.0
    %459 = vmatprep.subr.mxu0 0.0
    %460 = vmatpush1.msra.mxu0 0.0
    %461 = vmatprep.subr.mxu0 0.0
    %462 = vmatpush1.msra.mxu0 0.0
    %463 = vmatprep.subr.mxu0 0.0
    %464 = vmatpush1.msra.mxu0 0.0
    %465 = vmatprep.subr.mxu0 0.0
    %466 = vmatpush1.msra.mxu0 0.0
    %467 = vmatprep.subr.mxu0 0.0
    %468 = vmatpush1.msra.mxu0 0.0
    %469 = vmatprep.subr.mxu0 0.0
    %470 = vmatpush1.msra.mxu0 0.0
    %471 = vmatprep.subr.mxu0 0.0
    %472 = vmatpush1.msra.mxu0 0.0
    %473 = vmatprep.subr.mxu0 0.0
    %474 = vmatpush1.msra.mxu0 0.0
    %475 = vmatprep.subr.mxu0 0.0
    %476 = vmatpush1.msra.mxu0 0.0
    %477 = vmatprep.subr.mxu0 0.0
    %478 = vmatpush1.msra.mxu0 0.0
    %479 = vmatprep.subr.mxu0 0.0
    %480 = vmatpush1.msra.mxu0 0.0
    %481 = vmatprep.subr.mxu0 0.0
    %482 = vmatpush1.msra.mxu0 0.0
    %483 = vmatprep.subr.mxu0 0.0
    %484 = vmatpush1.msra.mxu0 0.0
    %485 = vmatprep.mubr.f32.mxu0 0.0
    %v486 = vand.u32 %v152, 4294901760
    %v487 = vsub.f32 %v152, %v486
    %v488 = vand.u32 %v487, 4294901760
    %489 = vmatmul.mubr.f32.gmra.mrb[0].mxu0 %v488
    %v490 = vpop.f32.mrb[0].mxu0
    %v491 = vadd.f32 %v413, %v490
    %v492 = vpop.f32.mrb[0].mxu0
    %493 = vdwg.mxu0
    %494 = vmatprep.subr.mxu0 0.0
    %v495 = vand.u32 %v135, 4294901760
    %v496 = vsub.f32 %v135, %v495
    %v497 = vand.u32 %v496, 4294901760
    %498 = vmatpush1.msra.mxu0 %v497
    %499 = vmatprep.subr.mxu0 0.0
    %v500 = vand.u32 %v136, 4294901760
    %v501 = vsub.f32 %v136, %v500
    %v502 = vand.u32 %v501, 4294901760
    %503 = vmatpush1.msra.mxu0 %v502
    %504 = vmatprep.subr.mxu0 0.0
    %v505 = vand.u32 %v137, 4294901760
    %v506 = vsub.f32 %v137, %v505
    %v507 = vand.u32 %v506, 4294901760
    %508 = vmatpush1.msra.mxu0 %v507
    %509 = vmatprep.subr.mxu0 0.0
    %v510 = vand.u32 %v138, 4294901760
    %v511 = vsub.f32 %v138, %v510
    %v512 = vand.u32 %v511, 4294901760
    %513 = vmatpush1.msra.mxu0 %v512
    %514 = vmatprep.subr.mxu0 0.0
    %v515 = vand.u32 %v156, 4294901760
    %v516 = vsub.f32 %v156, %v515
    %v517 = vand.u32 %v516, 4294901760
    %518 = vmatpush1.msra.mxu0 %v517
    %519 = vmatprep.subr.mxu0 0.0
    %520 = vmatpush1.msra.mxu0 0.0
    %521 = vmatprep.subr.mxu0 0.0
    %522 = vmatpush1.msra.mxu0 0.0
    %523 = vmatprep.subr.mxu0 0.0
    %524 = vmatpush1.msra.mxu0 0.0
    %525 = vmatprep.subr.mxu0 0.0
    %526 = vmatpush1.msra.mxu0 0.0
    %527 = vmatprep.subr.mxu0 0.0
    %528 = vmatpush1.msra.mxu0 0.0
    %529 = vmatprep.subr.mxu0 0.0
    %530 = vmatpush1.msra.mxu0 0.0
    %531 = vmatprep.subr.mxu0 0.0
    %532 = vmatpush1.msra.mxu0 0.0
    %533 = vmatprep.subr.mxu0 0.0
    %534 = vmatpush1.msra.mxu0 0.0
    %535 = vmatprep.subr.mxu0 0.0
    %536 = vmatpush1.msra.mxu0 0.0
    %537 = vmatprep.subr.mxu0 0.0
    %538 = vmatpush1.msra.mxu0 0.0
    %539 = vmatprep.subr.mxu0 0.0
    %540 = vmatpush1.msra.mxu0 0.0
    %541 = vmatprep.subr.mxu0 0.0
    %542 = vmatpush1.msra.mxu0 0.0
    %543 = vmatprep.subr.mxu0 0.0
    %544 = vmatpush1.msra.mxu0 0.0
    %545 = vmatprep.subr.mxu0 0.0
    %546 = vmatpush1.msra.mxu0 0.0
    %547 = vmatprep.subr.mxu0 0.0
    %548 = vmatpush1.msra.mxu0 0.0
    %549 = vmatprep.subr.mxu0 0.0
    %550 = vmatpush1.msra.mxu0 0.0
    %551 = vmatprep.subr.mxu0 0.0
    %552 = vmatpush1.msra.mxu0 0.0
    %553 = vmatprep.subr.mxu0 0.0
    %554 = vmatpush1.msra.mxu0 0.0
    %555 = vmatprep.subr.mxu0 0.0
    %556 = vmatpush1.msra.mxu0 0.0
    %557 = vmatprep.subr.mxu0 0.0
    %558 = vmatpush1.msra.mxu0 0.0
    %559 = vmatprep.subr.mxu0 0.0
    %560 = vmatpush1.msra.mxu0 0.0
    %561 = vmatprep.subr.mxu0 0.0
    %562 = vmatpush1.msra.mxu0 0.0
    %563 = vmatprep.subr.mxu0 0.0
    %564 = vmatpush1.msra.mxu0 0.0
    %565 = vmatprep.subr.mxu0 0.0
    %566 = vmatpush1.msra.mxu0 0.0
    %567 = vmatprep.subr.mxu0 0.0
    %568 = vmatpush1.msra.mxu0 0.0
    %569 = vmatprep.subr.mxu0 0.0
    %570 = vmatpush1.msra.mxu0 0.0
    %571 = vmatprep.subr.mxu0 0.0
    %572 = vmatpush1.msra.mxu0 0.0
    %573 = vmatprep.mubr.f32.mxu0 0.0
    %v574 = vand.u32 %v152, 4294901760
    %575 = vmatmul.mubr.f32.gmra.mrb[0].mxu0 %v574
    %v576 = vpop.f32.mrb[0].mxu0
    %v577 = vadd.f32 %v491, %v576
    %v578 = vpop.f32.mrb[0].mxu0
    %579 = vdwg.mxu0
    %580 = vmatprep.subr.mxu0 0.0
    %v581 = vand.u32 %v135, 4294901760
    %582 = vmatpush1.msra.mxu0 %v581
    %583 = vmatprep.subr.mxu0 0.0
    %v584 = vand.u32 %v136, 4294901760
    %585 = vmatpush1.msra.mxu0 %v584
    %586 = vmatprep.subr.mxu0 0.0
    %v587 = vand.u32 %v137, 4294901760
    %588 = vmatpush1.msra.mxu0 %v587
    %589 = vmatprep.subr.mxu0 0.0
    %v590 = vand.u32 %v138, 4294901760
    %591 = vmatpush1.msra.mxu0 %v590
    %592 = vmatprep.subr.mxu0 0.0
    %v593 = vand.u32 %v156, 4294901760
    %594 = vmatpush1.msra.mxu0 %v593
    %595 = vmatprep.subr.mxu0 0.0
    %596 = vmatpush1.msra.mxu0 0.0
    %597 = vmatprep.subr.mxu0 0.0
    %598 = vmatpush1.msra.mxu0 0.0
    %599 = vmatprep.subr.mxu0 0.0
    %600 = vmatpush1.msra.mxu0 0.0
    %601 = vmatprep.subr.mxu0 0.0
    %602 = vmatpush1.msra.mxu0 0.0
    %603 = vmatprep.subr.mxu0 0.0
    %604 = vmatpush1.msra.mxu0 0.0
    %605 = vmatprep.subr.mxu0 0.0
    %606 = vmatpush1.msra.mxu0 0.0
    %607 = vmatprep.subr.mxu0 0.0
    %608 = vmatpush1.msra.mxu0 0.0
    %609 = vmatprep.subr.mxu0 0.0
    %610 = vmatpush1.msra.mxu0 0.0
    %611 = vmatprep.subr.mxu0 0.0
    %612 = vmatpush1.msra.mxu0 0.0
    %613 = vmatprep.subr.mxu0 0.0
    %614 = vmatpush1.msra.mxu0 0.0
    %615 = vmatprep.subr.mxu0 0.0
    %616 = vmatpush1.msra.mxu0 0.0
    %617 = vmatprep.subr.mxu0 0.0
    %618 = vmatpush1.msra.mxu0 0.0
    %619 = vmatprep.subr.mxu0 0.0
    %620 = vmatpush1.msra.mxu0 0.0
    %621 = vmatprep.subr.mxu0 0.0
    %622 = vmatpush1.msra.mxu0 0.0
    %623 = vmatprep.subr.mxu0 0.0
    %624 = vmatpush1.msra.mxu0 0.0
    %625 = vmatprep.subr.mxu0 0.0
    %626 = vmatpush1.msra.mxu0 0.0
    %627 = vmatprep.subr.mxu0 0.0
    %628 = vmatpush1.msra.mxu0 0.0
    %629 = vmatprep.subr.mxu0 0.0
    %630 = vmatpush1.msra.mxu0 0.0
    %631 = vmatprep.subr.mxu0 0.0
    %632 = vmatpush1.msra.mxu0 0.0
    %633 = vmatprep.subr.mxu0 0.0
    %634 = vmatpush1.msra.mxu0 0.0
    %635 = vmatprep.subr.mxu0 0.0
    %636 = vmatpush1.msra.mxu0 0.0
    %637 = vmatprep.subr.mxu0 0.0
    %638 = vmatpush1.msra.mxu0 0.0
    %639 = vmatprep.subr.mxu0 0.0
    %640 = vmatpush1.msra.mxu0 0.0
    %641 = vmatprep.subr.mxu0 0.0
    %642 = vmatpush1.msra.mxu0 0.0
    %643 = vmatprep.subr.mxu0 0.0
    %644 = vmatpush1.msra.mxu0 0.0
    %645 = vmatprep.subr.mxu0 0.0
    %646 = vmatpush1.msra.mxu0 0.0
    %647 = vmatprep.subr.mxu0 0.0
    %648 = vmatpush1.msra.mxu0 0.0
    %649 = vmatprep.mubr.f32.mxu0 0.0
    %v650 = vand.u32 %v152, 4294901760
    %651 = vmatmul.mubr.f32.gmra.mrb[0].mxu0 %v650
    %v652 = vpop.f32.mrb[0].mxu0
    %v653 = vadd.f32 %v577, %v652
    %v654 = vpop.f32.mrb[0].mxu0
    %655 = vdwg.mxu0
    %v656 = vmax.f32 %v653, 1e-37
    %v657 = vlog2.pop %v656
    %v658 = vmul.f32 %v657, 0.6931472
    %v659 = vsub.f32 %v658, %v148
    %vm660 = vcmask 39936
    %v662 = vsel %vm660, %v50, 0
    %v665 = vsel %vm154, %v142, 0
    %667 = vmatprep.subr.mxu0 0.0
    %668 = vmatpush1.msra.mxu0 %v665
    %669 = vmatprep.subr.mxu0 0.0
    %670 = vmatpush1.msra.mxu0 0.0
    %671 = vmatprep.subr.mxu0 0.0
    %672 = vmatpush1.msra.mxu0 0.0
    %673 = vmatprep.subr.mxu0 0.0
    %674 = vmatpush1.msra.mxu0 0.0
    %675 = vmatprep.subr.mxu0 0.0
    %676 = vmatpush1.msra.mxu0 0.0
    %677 = vmatprep.subr.mxu0 0.0
    %678 = vmatpush1.msra.mxu0 0.0
    %679 = vmatprep.subr.mxu0 0.0
    %680 = vmatpush1.msra.mxu0 0.0
    %681 = vmatprep.subr.mxu0 0.0
    %682 = vmatpush1.msra.mxu0 0.0
    %683 = vmatprep.subr.mxu0 0.0
    %684 = vmatpush1.msra.mxu0 0.0
    %685 = vmatprep.subr.mxu0 0.0
    %686 = vmatpush1.msra.mxu0 0.0
    %687 = vmatprep.subr.mxu0 0.0
    %688 = vmatpush1.msra.mxu0 0.0
    %689 = vmatprep.subr.mxu0 0.0
    %690 = vmatpush1.msra.mxu0 0.0
    %691 = vmatprep.subr.mxu0 0.0
    %692 = vmatpush1.msra.mxu0 0.0
    %693 = vmatprep.subr.mxu0 0.0
    %694 = vmatpush1.msra.mxu0 0.0
    %695 = vmatprep.subr.mxu0 0.0
    %696 = vmatpush1.msra.mxu0 0.0
    %697 = vmatprep.subr.mxu0 0.0
    %698 = vmatpush1.msra.mxu0 0.0
    %699 = vmatprep.subr.mxu0 0.0
    %700 = vmatpush1.msra.mxu0 0.0
    %701 = vmatprep.subr.mxu0 0.0
    %702 = vmatpush1.msra.mxu0 0.0
    %703 = vmatprep.subr.mxu0 0.0
    %704 = vmatpush1.msra.mxu0 0.0
    %705 = vmatprep.subr.mxu0 0.0
    %706 = vmatpush1.msra.mxu0 0.0
    %707 = vmatprep.subr.mxu0 0.0
    %708 = vmatpush1.msra.mxu0 0.0
    %709 = vmatprep.subr.mxu0 0.0
    %710 = vmatpush1.msra.mxu0 0.0
    %711 = vmatprep.subr.mxu0 0.0
    %712 = vmatpush1.msra.mxu0 0.0
    %713 = vmatprep.subr.mxu0 0.0
    %714 = vmatpush1.msra.mxu0 0.0
    %715 = vmatprep.subr.mxu0 0.0
    %716 = vmatpush1.msra.mxu0 0.0
    %717 = vmatprep.subr.mxu0 0.0
    %718 = vmatpush1.msra.mxu0 0.0
    %719 = vmatprep.subr.mxu0 0.0
    %720 = vmatpush1.msra.mxu0 0.0
    %721 = vmatprep.subr.mxu0 0.0
    %722 = vmatpush1.msra.mxu0 0.0
    %723 = vmatprep.subr.mxu0 0.0
    %724 = vmatpush1.msra.mxu0 0.0
    %725 = vmatprep.subr.mxu0 0.0
    %726 = vmatpush1.msra.mxu0 0.0
    %727 = vmatprep.subr.mxu0 0.0
    %728 = vmatpush1.msra.mxu0 0.0
    %729 = vmatprep.subr.mxu0 0.0
    %730 = vmatpush1.msra.mxu0 0.0
    %731 = vmatprep.mubr.f32.mxu0 0.0
    %732 = vmatmul.mubr.f32.gmra.mrb[0].mxu0 %v662
    %v733 = vpop.f32.mrb[0].mxu0
    %v734 = vadd.f32 0.0, %v733
    %v735 = vpop.f32.mrb[0].mxu0
    %736 = vdwg.mxu0
    %vm737 = vcmp.eq.f32.partialorder %v734, %v143
    %v738 = vsel %vm737, 1, 0
    %v739 = vcvt.s32.f32 %v738
    %v740 = vld [vmem:[%s2] sm:$0x1]
    %v741 = vmul.f32 %v739, %v659
    %v742 = vsel %vm144, %v741, 0.0
    %v743 = vrot.slane %v742, 4
    %v744 = vadd.f32 %v742, %v743
    %v745 = vrot.slane %v744, 2
    %v746 = vadd.f32 %v744, %v745
    %v747 = vrot.slane %v746, 1
    %v748 = vadd.f32 %v746, %v747
    %v749 = vadd.f32 %v740, %v748
    %vm750 = vcmask 294912
    %751 = vst.msk [vmem:[%s2] sm:$0x1] %vm750, %v749
    %v752 = vld [vmem:[%s2 + $0x1] sm:$0x1]
    %v753 = vsel %vm144, %v739, 0.0
    %v754 = vrot.slane %v753, 4
    %v755 = vadd.f32 %v753, %v754
    %v756 = vrot.slane %v755, 2
    %v757 = vadd.f32 %v755, %v756
    %v758 = vrot.slane %v757, 1
    %v759 = vadd.f32 %v757, %v758
    %v760 = vadd.f32 %v752, %v759
    %761 = vst.msk [vmem:[%s2 + $0x1] sm:$0x1] %vm750, %v760
    // Predicated region
    $region22: #{_run_packed.1} parent=1 // pred_check
      _
    $region23: #{_run_packed.1} parent=1 // pred_check_branch
      %763 = sbr.rel (0) target = $region25
    $region24: #{_run_packed.1} parent=1 // pred_region
      _
    $region25: #{_run_packed.1} parent=1 // pred_fallthru
      _
    // Predicated region
    $region26: #{_run_packed.1} parent=1 // pred_check
      _
    $region27: #{_run_packed.1} parent=1 // pred_check_branch
      %765 = sbr.rel (0) target = $region29
    $region28: #{_run_packed.1} parent=1 // pred_region
      _
    $region29: #{_run_packed.1} parent=1 // pred_fallthru
      _
    %766 = vsyncpa [#allocation3], 1
    %767 = vsyncpa [#allocation5], 1

</llo_original>
